<compile_context>
chip_gen: v7x
topology: tpu7x:2x2x1
jax: 0.10.0
libtpu: 0.0.40
codegen_flags: <defaults>
</compile_context>

<pallas_src>
import math

import jax
import jax.numpy as jnp
from jax.experimental import pallas as pl
from jax.experimental.pallas import tpu as pltpu


_LANES = 512           # lane-dense slab width (multiple of 128)
_MAX_TILE_ROWS = 1024  # (1024, 512) f32 tile = 2 MiB/input -> 8 MiB double-buffered


def _round_up(x: int, m: int) -> int:
    return ((x + m - 1) // m) * m


def _make_kernel(tile_rows: int, lanes: int):
    def kernel(a_ref, b_ref, acc_ref):
        j = pl.program_id(1)

        @pl.when(j == 0)
        def _():
            acc_ref[...] = jnp.zeros_like(acc_ref)

        a = a_ref[...].astype(jnp.float32)
        b = b_ref[...].astype(jnp.float32)
        d = jnp.abs(a - b)
        # Reduce the tile's row axis down to one vreg-shaped (8, lanes) partial
        # sum: pure VPU adds, no cross-lane (XLU) work in the hot loop.
        acc_ref[...] += jnp.sum(d.reshape(tile_rows // 8, 8, lanes), axis=0)

    return kernel


def fftmix_loss(img1, img2, alpha: float = 0.3):
    """FFTMixLoss forward (L1 criterion, reduction='mean')."""
    assert img1.shape == img2.shape
    total = math.prod(img1.shape)

    lanes = _LANES
    rows = -(-total // lanes)                                 # cdiv
    tile_rows = min(_MAX_TILE_ROWS, _round_up(rows, 16))      # 16: bf16-safe sublane tile
    splits = 2 if rows >= 2 * tile_rows else 1                # shard across v7x's 2 TCs
    rows_padded = _round_up(rows, splits * tile_rows)
    padded_total = rows_padded * lanes
    num_tiles = rows_padded // (splits * tile_rows)

    # Zero-pad the tail: padded elements contribute |0 - 0| = 0 to the sums.
    pad = padded_total - total
    a = jnp.pad(img1.reshape(-1), (0, pad)).reshape(rows_padded, lanes)
    b = jnp.pad(img2.reshape(-1), (0, pad)).reshape(rows_padded, lanes)

    partials = pl.pallas_call(
        _make_kernel(tile_rows, lanes),
        out_shape=jax.ShapeDtypeStruct((splits * 8, lanes), jnp.float32),
        grid_spec=pltpu.PrefetchScalarGridSpec(
            num_scalar_prefetch=0,
            grid=(splits, num_tiles),
            in_specs=[
                pl.BlockSpec((tile_rows, lanes),
                             lambda c, j: (c * num_tiles + j, 0)),
                pl.BlockSpec((tile_rows, lanes),
                             lambda c, j: (c * num_tiles + j, 0)),
            ],
            # One resident (8, lanes) accumulator block per core; lane-dense,
            # unmasked stores.
            out_specs=pl.BlockSpec((8, lanes), lambda c, j: (c, 0)),
        ),
        compiler_params=pltpu.CompilerParams(
            dimension_semantics=("parallel", "arbitrary"),
        ),
    )(a, b)

    l1_sum = jnp.sum(partials)
    total_f = jnp.float32(total)

    crit_loss = l1_sum / total_f
    # Both rfft bins are purely real and equal to the input, so
    # sum(|F1 - F2|) = 2 * sum(|d|), averaged over 2*total complex elements.
    fft_loss = (2.0 * l1_sum) / (2.0 * total_f)
    return alpha * fft_loss + (1.0 - alpha) * crit_loss


def _reference(img1, img2, alpha=0.3):
    # Pure-JAX reference of the same math (sanity check).
    d = jnp.abs(img1.astype(jnp.float32) - img2.astype(jnp.float32))
    crit = jnp.mean(d)
    fft = jnp.mean(jnp.stack([d, d], -1))   # both rfft bins have magnitude |d|
    return alpha * fft + (1.0 - alpha) * crit


if __name__ == "__main__":
    key = jax.random.PRNGKey(0)
    k1, k2 = jax.random.split(key)
    shape = (2, 4, 16, 16)  # NCHW
    img1 = jax.random.normal(k1, shape, dtype=jnp.float32)
    img2 = jax.random.normal(k2, shape, dtype=jnp.float32)

    loss = fftmix_loss(img1, img2, alpha=0.3)
    loss = jax.block_until_ready(loss)

    ref = _reference(img1, img2, alpha=0.3)
    assert jnp.allclose(loss, ref, rtol=1e-5, atol=1e-5), (loss, ref)

    print("KERNEL_OK")
</pallas_src>

<mosaic_0001>
module attributes {stable_mosaic.version = 11 : i64} {
  func.func @kernel(%arg0: i32, %arg1: i32, %arg2: memref<16x512xf32, #tpu.memory_space<vmem>>, %arg3: memref<16x512xf32, #tpu.memory_space<vmem>>, %arg4: memref<8x512xf32, #tpu.memory_space<vmem>>) attributes {dimension_semantics = [#tpu.dimension_semantics<parallel>, #tpu.dimension_semantics<arbitrary>], iteration_bounds = array<i64: 1, 1>, scalar_prefetch = 0 : i64, scratch_operands = 0 : i64, tpu.core_type = #tpu.core_type<tc>, window_params = [{transform_indices = @transform_0, window_bounds = array<i64: 16, 512>}, {transform_indices = @transform_1, window_bounds = array<i64: 16, 512>}, {transform_indices = @transform_2, window_bounds = array<i64: 8, 512>}]} {
    %c0_i32 = arith.constant 0 : i32
    %0 = arith.cmpi eq, %arg1, %c0_i32 : i32
    %1 = arith.extui %0 : i1 to i32
    %c0_i32_0 = arith.constant 0 : i32
    %2 = arith.cmpi ne, %1, %c0_i32_0 : i32
    scf.if %2 {
      %cst_8 = arith.constant 0.000000e+00 : f32
      %12 = vector.broadcast %cst_8 : f32 to vector<8x512xf32>
      %c0_9 = arith.constant 0 : index
      %c0_10 = arith.constant 0 : index
      %13 = vector.load %arg4[%c0_9, %c0_10] : memref<8x512xf32, #tpu.memory_space<vmem>>, vector<8x512xf32>
      tpu.vector_store %arg4[%c0_9, %c0_10], %12 {strides = array<i32>} : memref<8x512xf32, #tpu.memory_space<vmem>>, vector<8x512xf32>,
    } else {
    }
    %c0 = arith.constant 0 : index
    %c0_1 = arith.constant 0 : index
    %3 = vector.load %arg2[%c0, %c0_1] : memref<16x512xf32, #tpu.memory_space<vmem>>, vector<16x512xf32>
    %c0_2 = arith.constant 0 : index
    %c0_3 = arith.constant 0 : index
    %4 = vector.load %arg3[%c0_2, %c0_3] : memref<16x512xf32, #tpu.memory_space<vmem>>, vector<16x512xf32>
    %5 = arith.subf %3, %4 : vector<16x512xf32>
    %6 = math.absf %5 : vector<16x512xf32>
    %c0_4 = arith.constant 0 : index
    %c0_5 = arith.constant 0 : index
    %7 = vector.load %arg4[%c0_4, %c0_5] : memref<8x512xf32, #tpu.memory_space<vmem>>, vector<8x512xf32>
    %8 = vector.shape_cast %6 : vector<16x512xf32> to vector<2x8x512xf32>
    %cst = arith.constant dense<0.000000e+00> : vector<8x512xf32>
    %9 = vector.multi_reduction <add>, %8, %cst [0] : vector<2x8x512xf32> to vector<8x512xf32>
    %10 = arith.addf %7, %9 : vector<8x512xf32>
    %c0_6 = arith.constant 0 : index
    %c0_7 = arith.constant 0 : index
    %11 = vector.load %arg4[%c0_6, %c0_7] : memref<8x512xf32, #tpu.memory_space<vmem>>, vector<8x512xf32>
    tpu.vector_store %arg4[%c0_6, %c0_7], %10 {strides = array<i32>} : memref<8x512xf32, #tpu.memory_space<vmem>>, vector<8x512xf32>,
    return
  }
  func.func @transform_0(%arg0: i32, %arg1: i32) -> (i32, i32) {
    %c1_i32 = arith.constant 1 : i32
    %0 = arith.muli %arg0, %c1_i32 : i32
    %1 = arith.addi %0, %arg1 : i32
    %c0_i32 = arith.constant 0 : i32
    %c0_i32_0 = arith.constant 0 : i32
    return %1, %c0_i32 : i32, i32
  }
  func.func @transform_1(%arg0: i32, %arg1: i32) -> (i32, i32) {
    %c1_i32 = arith.constant 1 : i32
    %0 = arith.muli %arg0, %c1_i32 : i32
    %1 = arith.addi %0, %arg1 : i32
    %c0_i32 = arith.constant 0 : i32
    %c0_i32_0 = arith.constant 0 : i32
    return %1, %c0_i32 : i32, i32
  }
  func.func @transform_2(%arg0: i32, %arg1: i32) -> (i32, i32) {
    %c0_i32 = arith.constant 0 : i32
    %c0_i32_0 = arith.constant 0 : i32
    return %arg0, %c0_i32 : i32, i32
  }
}

</mosaic_0001>

<llo_original>
// kernel: tpu_custom_call.1
$region0: #{tpu_custom_call.1}
  #allocation0 [shape = 'u32[]', space=smem, size = 0x4, offset = 0x4, fixed_abs, tag = 'smem constant byte address 0x4 - core index']
  #allocation1 [shape = 'u32[144,128]{1,0:T(1,128)}', space=vmem, size = 0x12000, scoped, tag = 'internal scratch']
  %s0 = inlined_call_operand.hbm [shape: f32[16,512], index: 0, kind: input, shape index: {}]
  %s1 = inlined_call_operand.hbm [shape: f32[16,512], index: 1, kind: input, shape index: {}]
  %s2 = inlined_call_operand.hbm [shape: f32[8,512], index: 2, kind: output, shape index: {}]
  %s3 = sld [smem:[#allocation0]]
  $region30: #{tpu_custom_call.1} parent=0
    _
  %s5 = ssub.s32 1, %s3
  %s6 = scalar_select 0, %s5, %s3
  $region1: #{tpu_custom_call.1} parent=0
    #allocation2 [shape = 'u8[32768]{0}', space=vmem, size = 0x8000, scoped, tag = 'input window, operand 0, single buffered']
    #allocation3 [shape = 's32[1]{0}', space=sflag, size = 0x4, scoped, tag = 'scoped memory for tpu_custom_call.1']
    #allocation4 [shape = 's32[1]{0}', space=sflag, size = 0x4, scoped, tag = 'scoped memory for tpu_custom_call.1']
    #allocation5 [shape = 'u8[32768]{0}', space=vmem, size = 0x8000, scoped, tag = 'input window, operand 1, single buffered']
    #allocation6 [shape = 's32[1]{0}', space=sflag, size = 0x4, scoped, tag = 'scoped memory for tpu_custom_call.1']
    #allocation7 [shape = 'u8[16384]{0}', space=vmem, size = 0x4000, scoped, tag = 'output window, operand 0, single buffered']
    %7 = vsyncpa [#allocation3], 0
    %8 = vsyncpa [#allocation6], 0
    %9 = vsyncpa [#allocation4], 0
    // Predicated region
    $region2: #{tpu_custom_call.1} parent=1 // pred_check
      _
    $region3: #{tpu_custom_call.1} parent=1 // pred_check_branch
      %11 = sbr.rel (0) target = $region5
    $region4: #{tpu_custom_call.1} parent=1 // pred_region
      %s12 = sadd.s32 0, 0
      %s13 = smul.u32 2, %s12
      %s15 = ssub.s32 1024, 1024
      %16 = vsyncadd [#allocation3], %s15
      %s17 = smul.addr %s13, 4
      %s18 = smul.addr %s17, 128
      %s19 = scalar_lea.hbm %s0, %s18
      %s20 = sshll.u32 [#allocation2], 4
      %s21 = int_to_ptr.vmem [resolvable:$true] %s20
      %26 = dma.hbm_to_vmem [thread:$0]  %s19, 1024, %s21, [#allocation3], 512, 512, 32
    $region5: #{tpu_custom_call.1} parent=1 // pred_fallthru
      _
    // Predicated region
    $region6: #{tpu_custom_call.1} parent=1 // pred_check
      _
    $region7: #{tpu_custom_call.1} parent=1 // pred_check_branch
      %28 = sbr.rel (0) target = $region9
    $region8: #{tpu_custom_call.1} parent=1 // pred_region
      %s29 = sadd.s32 0, 0
      %s30 = smul.u32 2, %s29
      %s32 = ssub.s32 1024, 1024
      %33 = vsyncadd [#allocation6], %s32
      %s34 = smul.addr %s30, 4
      %s35 = smul.addr %s34, 128
      %s36 = scalar_lea.hbm %s1, %s35
      %s37 = sshll.u32 [#allocation5], 4
      %s38 = int_to_ptr.vmem [resolvable:$true] %s37
      %43 = dma.hbm_to_vmem [thread:$0]  %s36, 1024, %s38, [#allocation6], 512, 512, 32
    $region9: #{tpu_custom_call.1} parent=1 // pred_fallthru
      _
    // Predicated region
    $region10: #{tpu_custom_call.1} parent=1 // pred_check
      _
    $region11: #{tpu_custom_call.1} parent=1 // pred_check_branch
      %45 = sbr.rel (0) target = $region13
    $region12: #{tpu_custom_call.1} parent=1 // pred_region
      %46 = dma.done [#allocation3], 1024
    $region13: #{tpu_custom_call.1} parent=1 // pred_fallthru
      _
    // Predicated region
    $region14: #{tpu_custom_call.1} parent=1 // pred_check
      _
    $region15: #{tpu_custom_call.1} parent=1 // pred_check_branch
      %48 = sbr.rel (0) target = $region17
    $region16: #{tpu_custom_call.1} parent=1 // pred_region
      %49 = dma.done [#allocation6], 1024
    $region17: #{tpu_custom_call.1} parent=1 // pred_fallthru
      _
    %s50 = sadd.s32 0, 0
    %s51 = smul.u32 2, %s50
    %s52 = sadd.s32 0, 0
    %s53 = smul.u32 2, %s52
    %p54 = scmp.eq.s32.totalorder 0, 0
    // Predicated region
    $region18: #{tpu_custom_call.1} parent=1 // pred_check
      %p55 = pneg %p54
    $region19: #{tpu_custom_call.1} parent=1 // pred_check_branch
      %57 = sbr.rel (%p55) target = $region21
    $region20: #{tpu_custom_call.1} parent=1 // pred_region
      %58 = vst [vmem:[#allocation7] sm:$0xff] 0.0
      %59 = vst [vmem:[#allocation7 + $0x8] sm:$0xff] 0.0
      %60 = vst [vmem:[#allocation7 + $0x10] sm:$0xff] 0.0
      %61 = vst [vmem:[#allocation7 + $0x18] sm:$0xff] 0.0
    $region21: #{tpu_custom_call.1} parent=1 // pred_fallthru
      _
    %v62 = vld [vmem:[#allocation2] sm:$0xff]
    %v63 = vld [vmem:[#allocation2 + $0x8] sm:$0xff]
    %v64 = vld [vmem:[#allocation2 + $0x10] sm:$0xff]
    %v65 = vld [vmem:[#allocation2 + $0x18] sm:$0xff]
    %v66 = vld [vmem:[#allocation2 + $0x20] sm:$0xff]
    %v67 = vld [vmem:[#allocation2 + $0x28] sm:$0xff]
    %v68 = vld [vmem:[#allocation2 + $0x30] sm:$0xff]
    %v69 = vld [vmem:[#allocation2 + $0x38] sm:$0xff]
    %v70 = vld [vmem:[#allocation5] sm:$0xff]
    %v71 = vld [vmem:[#allocation5 + $0x8] sm:$0xff]
    %v72 = vld [vmem:[#allocation5 + $0x10] sm:$0xff]
    %v73 = vld [vmem:[#allocation5 + $0x18] sm:$0xff]
    %v74 = vld [vmem:[#allocation5 + $0x20] sm:$0xff]
    %v75 = vld [vmem:[#allocation5 + $0x28] sm:$0xff]
    %v76 = vld [vmem:[#allocation5 + $0x30] sm:$0xff]
    %v77 = vld [vmem:[#allocation5 + $0x38] sm:$0xff]
    %v78 = vsub.f32 %v62, %v70
    %v79 = vsub.f32 %v63, %v71
    %v80 = vsub.f32 %v64, %v72
    %v81 = vsub.f32 %v65, %v73
    %v82 = vsub.f32 %v66, %v74
    %v83 = vsub.f32 %v67, %v75
    %v84 = vsub.f32 %v68, %v76
    %v85 = vsub.f32 %v69, %v77
    %v86 = vand.u32 2147483647, %v78
    %v87 = vand.u32 2147483647, %v79
    %v88 = vand.u32 2147483647, %v80
    %v89 = vand.u32 2147483647, %v81
    %v90 = vand.u32 2147483647, %v82
    %v91 = vand.u32 2147483647, %v83
    %v92 = vand.u32 2147483647, %v84
    %v93 = vand.u32 2147483647, %v85
    %v94 = vld [vmem:[#allocation7] sm:$0xff]
    %v95 = vld [vmem:[#allocation7 + $0x8] sm:$0xff]
    %v96 = vld [vmem:[#allocation7 + $0x10] sm:$0xff]
    %v97 = vld [vmem:[#allocation7 + $0x18] sm:$0xff]
    %v98 = vadd.f32 %v86, %v90
    %v99 = vadd.f32 %v87, %v91
    %v100 = vadd.f32 %v88, %v92
    %v101 = vadd.f32 %v89, %v93
    %v102 = vadd.f32 %v94, %v98
    %v103 = vadd.f32 %v95, %v99
    %v104 = vadd.f32 %v96, %v100
    %v105 = vadd.f32 %v97, %v101
    %106 = vst [vmem:[#allocation7] sm:$0xff] %v102
    %107 = vst [vmem:[#allocation7 + $0x8] sm:$0xff] %v103
    %108 = vst [vmem:[#allocation7 + $0x10] sm:$0xff] %v104
    %109 = vst [vmem:[#allocation7 + $0x18] sm:$0xff] %v105
    // Predicated region
    $region22: #{tpu_custom_call.1} parent=1 // pred_check
      _
    $region23: #{tpu_custom_call.1} parent=1 // pred_check_branch
      %111 = sbr.rel (0) target = $region25
    $region24: #{tpu_custom_call.1} parent=1 // pred_region
      %s113 = ssub.s32 512, 512
      %114 = vsyncadd [#allocation4], %s113
      %s116 = sshll.u32 [#allocation7], 4
      %s117 = int_to_ptr.vmem [resolvable:$true] %s116
      %119 = dma.vmem_to_hbm [thread:$0]  %s117, 512, %s2, [#allocation4]
    $region25: #{tpu_custom_call.1} parent=1 // pred_fallthru
      _
    // Predicated region
    $region26: #{tpu_custom_call.1} parent=1 // pred_check
      _
    $region27: #{tpu_custom_call.1} parent=1 // pred_check_branch
      %121 = sbr.rel (0) target = $region29
    $region28: #{tpu_custom_call.1} parent=1 // pred_region
      %122 = dma.done [#allocation4], 512
    $region29: #{tpu_custom_call.1} parent=1 // pred_fallthru
      _
    %123 = vsyncpa [#allocation3], 1
    %124 = vsyncpa [#allocation6], 1
    %125 = vsyncpa [#allocation4], 1

</llo_original>
